<compile_context>
chip_gen: v5e
topology: v5e:2x2
jax: 0.10.0
libtpu: 0.0.40
codegen_flags: <defaults>
</compile_context>

<pallas_src>
import functools

import jax
import jax.numpy as jnp
from jax.experimental import pallas as pl
from jax.experimental.pallas import tpu as pltpu


# ----------------------------- in-kernel helpers --------------------------- #

def _col_masks(C, H, W):
    """Boolean [C, H*W] masks marking the first / last column of every image row."""
    m_idx = jax.lax.broadcasted_iota(jnp.int32, (C, H * W), 1)
    w_idx = m_idx % W
    return w_idx == 0, w_idx == W - 1


def _shifted_tap(v, dh, dw, W, col0, colL):
    """tap[c, h*W + w] = v[c, (h+dh)*W + (w+dw)], zero outside the image.

    v is a [C, H*W] tile (spatial on lanes).  The shift is a static lane offset of the whole
    tile (one shifted copy, ~2 vregs here); row over/underflow is handled by the zero fill and
    column wrap-around is fixed with a precomputed VPU mask.
    """
    C, M = v.shape
    d = dh * W + dw
    if d > 0:
        t = jnp.concatenate([v[:, d:], jnp.zeros((C, d), v.dtype)], axis=1)
    elif d < 0:
        t = jnp.concatenate([jnp.zeros((C, -d), v.dtype), v[:, :M + d]], axis=1)
    else:
        t = v
    if dw == -1:
        t = jnp.where(col0, jnp.zeros_like(t), t)
    elif dw == 1:
        t = jnp.where(colL, jnp.zeros_like(t), t)
    return t


def _patch_3x3(v, W, col0, colL):
    """[C, M] -> [9*C, M] patch matrix for a 3x3 / stride-1 / pad-1 conv.

    Rows are tap-major, channel-minor (tap t = 3*(dh+1) + (dw+1)); the concat runs along the
    sublane axis, not the lane axis.
    """
    taps = [_shifted_tap(v, dh, dw, W, col0, colL)
            for dh in (-1, 0, 1) for dw in (-1, 0, 1)]
    return jnp.concatenate(taps, axis=0)


# ------------------------------ Pallas kernels ------------------------------ #

def _block_stride1_kernel(x_ref, w2_ref, w1_ref, out_ref, *, H, W, C):
    """out^T = relu(W1 @ patch(relu(W2 @ patch(x))) + x); both convs 3x3, s=1, p=1."""
    col0, colL = _col_masks(C, H, W)
    x32 = x_ref[...].astype(jnp.float32)                              # [C, M]

    # conv2 + ReLU: one MXU matmul, lanes = H*W (lane-dense output).
    p2 = _patch_3x3(x32, W, col0, colL).astype(w2_ref.dtype)          # [9C, M] bf16
    h = jnp.maximum(jnp.dot(w2_ref[...], p2,
                            preferred_element_type=jnp.float32), 0.0)  # [C, M] f32

    # conv1 on h (kept in VMEM/vregs, never written to HBM) + identity residual + ReLU.
    p1 = _patch_3x3(h, W, col0, colL).astype(w1_ref.dtype)
    out = jnp.dot(w1_ref[...], p1, preferred_element_type=jnp.float32)
    out_ref[...] = jnp.maximum(out + x32, 0.0).astype(out_ref.dtype)


def _block_stride2_kernel(x_ref, w2_ref, wf_ref, out_ref, *, H, W, Cx, Cy):
    """Fused block for stride-2 conv1: sub-pixel phase decomposition, residual folded in.

    Output is phase-packed: out[(2a+b)*Cy + c, h*W + w] = y[c, 2h+a, 2w+b].
    """
    col0, colL = _col_masks(Cx, H, W)
    x32 = x_ref[...].astype(jnp.float32)                              # [Cx, M]

    # conv2 (3x3, s=1, p=1) + ReLU.
    p2 = _patch_3x3(x32, W, col0, colL).astype(w2_ref.dtype)
    h = jnp.maximum(jnp.dot(w2_ref[...], p2,
                            preferred_element_type=jnp.float32), 0.0)  # [Cx, M] f32

    # conv1 (3x3, s=2, p=1) as its 4 sub-pixel phases on the UNdilated h (zero halo only on
    # the high side) + the 1x1 stride-2 residual on the undilated x, all in ONE matmul:
    #   patch rows:  [h(m,n), h(m,n+1), h(m+1,n), h(m+1,n+1), x(m,n)]  -> K = 5*Cx
    #   weight rows: 4 output phases, Cy channels each                 -> rows = 4*Cy
    taps = [_shifted_tap(h, dh, dw, W, col0, colL)
            for dh in (0, 1) for dw in (0, 1)]
    pf = jnp.concatenate(taps + [x32], axis=0).astype(wf_ref.dtype)   # [5*Cx, M]
    out = jnp.dot(wf_ref[...], pf, preferred_element_type=jnp.float32)  # [4*Cy, M]
    out_ref[...] = jnp.maximum(out, 0.0).astype(out_ref.dtype)


# ------------------------- weight preparation (host) ------------------------ #

def _flip_hwio(wt):
    """PyTorch ConvTranspose2d weight [Cin, Cout, KH, KW] -> spatially flipped [KH,KW,Cin,Cout]."""
    return jnp.transpose(wt, (2, 3, 0, 1))[::-1, ::-1, :, :]


def _flip_im2col_mat_T(wt):
    """[Cin, Cout, 3, 3] -> [Cout, 9*Cin] matching the _patch_3x3 tap/channel row ordering."""
    cin, cout = wt.shape[0], wt.shape[1]
    return _flip_hwio(wt).reshape(9 * cin, cout).T


def _stride2_phase_mat_T(w1, wres):
    """Pack conv1 (3x3, s=2, p=1) phase weights + 1x1 s=2 residual into one [4*Cy, 5*Cx] matrix."""
    cx, cy = w1.shape[0], w1.shape[1]
    wfull = jnp.zeros((5 * cx, 4 * cy), jnp.float32)
    for a in range(2):           # output row phase
        for b in range(2):       # output col phase
            p = 2 * a + b
            for dh in range(2):  # h row offset
                for dw in range(2):
                    kh, kw = a + 1 - 2 * dh, b + 1 - 2 * dw
                    if 0 <= kh < 3 and 0 <= kw < 3:
                        q = 2 * dh + dw
                        wfull = wfull.at[q * cx:(q + 1) * cx,
                                         p * cy:(p + 1) * cy].set(w1[:, :, kh, kw])
    # 1x1 stride-2 residual only contributes to the even/even phase (p = 0).
    wfull = wfull.at[4 * cx:5 * cx, 0:cy].set(wres[:, :, 0, 0])
    return wfull.T


def _vmem_budget_bytes():
    """Generation-aware scoped-VMEM budget: half of physical, capped at 64 MiB."""
    cap = 64 * 1024 * 1024          # conservative fallback (-> 32 MiB budget)
    try:
        cap = int(getattr(pltpu.get_tpu_info(), "vmem_capacity_bytes", cap))
    except Exception:
        pass
    return max(16 * 1024 * 1024, min(cap // 2, 64 * 1024 * 1024))


# --------------------------------- module ----------------------------------- #

class ReverseBasicBlockPallas:
    """Pallas implementation of ReverseBasicBlock(input, output, stride)."""

    def __init__(self, input_ch, output_ch, stride, key, compute_dtype=jnp.bfloat16):
        if stride == 1 and input_ch != output_ch:
            # PyTorch itself rejects this config (output_padding must be < stride).
            raise ValueError("stride=1 with input != output is invalid for ConvTranspose2d")
        if stride not in (1, 2):
            # TODO(synk): general-stride sub-pixel decomposition (ResNet decoders use 1/2 only).
            raise NotImplementedError("only stride 1 and 2 are supported")

        self.input_ch, self.output_ch, self.stride = input_ch, output_ch, stride
        self.op = 0 if input_ch == output_ch else 1
        self.compute_dtype = compute_dtype

        k1, k2, k3 = jax.random.split(key, 3)
        # PyTorch ConvTranspose2d weight layout: [in_channels, out_channels, KH, KW].
        self.w1 = 0.1 * jax.random.normal(k1, (output_ch, input_ch, 3, 3), jnp.float32)
        self.w2 = 0.1 * jax.random.normal(k2, (output_ch, output_ch, 3, 3), jnp.float32)
        if stride != 1 or input_ch != output_ch:
            self.wres = 0.1 * jax.random.normal(k3, (output_ch, input_ch, 1, 1), jnp.float32)
        else:
            self.wres = None  # identity residual

        # Kernel-ready [Cout, K] weight matrices, built once, stored in the MXU dtype.
        self.w2_mat = _flip_im2col_mat_T(self.w2).astype(compute_dtype)          # [Cx, 9*Cx]
        if stride == 1:
            self.w1_mat = _flip_im2col_mat_T(self.w1).astype(compute_dtype)      # [Cy, 9*Cx]
        else:
            self.w_full = _stride2_phase_mat_T(self.w1, self.wres).astype(compute_dtype)  # [4*Cy, 5*Cx]

    # -------- Pallas forward --------
    def __call__(self, x_nchw):
        N, Cx, H, W = x_nchw.shape
        assert Cx == self.output_ch
        Cy = self.input_ch
        M = H * W
        # NCHW is already channel-sublane / spatial-lane; flattening H*W is a free reshape.
        # bf16 halves HBM bytes for the activation (a real decoder stack would already emit bf16).
        x2 = x_nchw.reshape(N, Cx, M).astype(self.compute_dtype)

        # TODO(synk): for large H*W*C on v7x (64 MiB VMEM), add an H-tile grid axis with a
        # 1-row halo (manual DMA) so megacore shards over (batch x H-tiles); whole-image
        # blocks are fine at decoder-sized images and on the 128-MiB parts.
        cparams = pltpu.CompilerParams(
            dimension_semantics=("parallel",),          # batch axis across TCs
            vmem_limit_bytes=_vmem_budget_bytes())

        # NOTE: the weight blocks are constant across the grid; at 144-640 elements their
        # double-buffer cost is negligible, so no pipeline_mode override is used.
        if self.stride == 1:
            kern = functools.partial(_block_stride1_kernel, H=H, W=W, C=Cx)
            out = pl.pallas_call(
                kern,
                out_shape=jax.ShapeDtypeStruct((N, Cx, M), jnp.float32),
                grid=(N,),
                in_specs=[
                    pl.BlockSpec((None, Cx, M), lambda n: (n, 0, 0)),
                    pl.BlockSpec((Cx, 9 * Cx), lambda n: (0, 0)),
                    pl.BlockSpec((Cx, 9 * Cx), lambda n: (0, 0)),
                ],
                out_specs=pl.BlockSpec((None, Cx, M), lambda n: (n, 0, 0)),
                compiler_params=cparams,
            )(x2, self.w2_mat, self.w1_mat)
            return out.reshape(N, Cx, H, W)               # already NCHW; reshape is free

        # stride == 2
        kern = functools.partial(_block_stride2_kernel, H=H, W=W, Cx=Cx, Cy=Cy)
        packed = pl.pallas_call(
            kern,
            out_shape=jax.ShapeDtypeStruct((N, 4 * Cy, M), jnp.float32),
            grid=(N,),
            in_specs=[
                pl.BlockSpec((None, Cx, M), lambda n: (n, 0, 0)),
                pl.BlockSpec((Cx, 9 * Cx), lambda n: (0, 0)),
                pl.BlockSpec((4 * Cy, 5 * Cx), lambda n: (0, 0)),
            ],
            out_specs=pl.BlockSpec((None, 4 * Cy, M), lambda n: (n, 0, 0)),
            compiler_params=cparams,
        )(x2, self.w2_mat, self.w_full)

        # Depth-to-space (small wrapper transpose on the already-NCHW packed output):
        # packed[n, (2a+b)*Cy + c, h*W + w] -> out[n, c, 2h+a, 2w+b]
        out = packed.reshape(N, 2, 2, Cy, H, W)
        out = jnp.transpose(out, (0, 3, 4, 1, 5, 2)).reshape(N, Cy, 2 * H, 2 * W)
        Ho = (H - 1) * 2 - 2 + 3 + self.op
        Wo = (W - 1) * 2 - 2 + 3 + self.op
        return out[:, :, :Ho, :Wo]

    # -------- pure-JAX reference (XLA convs) for validation --------
    def reference(self, x_nchw):
        def conv_t(x_nhwc, wt, stride, padding, output_padding):
            k = wt.shape[2]
            lo = k - 1 - padding
            hi = k - 1 - padding + output_padding
            return jax.lax.conv_general_dilated(
                x_nhwc, _flip_hwio(wt), window_strides=(1, 1),
                padding=((lo, hi), (lo, hi)), lhs_dilation=(stride, stride),
                dimension_numbers=("NHWC", "HWIO", "NHWC"),
                precision=jax.lax.Precision.HIGHEST)

        x = jnp.transpose(x_nchw, (0, 2, 3, 1))
        h = jax.nn.relu(conv_t(x, self.w2, 1, 1, 0))
        main = conv_t(h, self.w1, self.stride, 1, self.op)
        if self.wres is not None:
            res = conv_t(x, self.wres, self.stride, 0, self.op)
        else:
            res = x
        out = jax.nn.relu(main + res)
        return jnp.transpose(out, (0, 3, 1, 2))


if __name__ == "__main__":
    key = jax.random.PRNGKey(0)
    kx, kp1, kp2, kp3 = jax.random.split(key, 4)

    x = jax.random.normal(kx, (2, 4, 16, 16), jnp.float32)  # NCHW, channels = output_ch

    def check(blk, y, name):
        r = blk.reference(x)
        err = float(jnp.max(jnp.abs(y - r)))
        # bf16 MXU inputs vs f32 HIGHEST reference -> a few e-3 absolute; keep headroom.
        assert jnp.allclose(y, r, atol=5e-2, rtol=5e-2), (name, err)

    # Case 1: channel-expanding stride-2 block (1x1 conv residual, output_padding=1).
    blk2 = ReverseBasicBlockPallas(input_ch=8, output_ch=4, stride=2, key=kp1)
    y2 = jax.block_until_ready(blk2(x))
    assert y2.shape == (2, 8, 32, 32), y2.shape
    check(blk2, y2, "stride2_expand")

    # Case 2: same-channel stride-1 block (identity residual).
    blk1 = ReverseBasicBlockPallas(input_ch=4, output_ch=4, stride=1, key=kp2)
    y1 = jax.block_until_ready(blk1(x))
    assert y1.shape == (2, 4, 16, 16), y1.shape
    check(blk1, y1, "stride1_identity")

    # Case 3: same-channel stride-2 block (1x1 conv residual, output_padding=0 -> odd size).
    blk3 = ReverseBasicBlockPallas(input_ch=4, output_ch=4, stride=2, key=kp3)
    y3 = jax.block_until_ready(blk3(x))
    assert y3.shape == (2, 4, 31, 31), y3.shape
    check(blk3, y3, "stride2_same")

    print("KERNEL_OK")
</pallas_src>

<mosaic_0001>
module attributes {stable_mosaic.version = 11 : i64} {
  func.func @_block_stride2_kernel(%arg0: i32, %arg1: memref<1x4x256xbf16, #tpu.memory_space<vmem>>, %arg2: memref<4x36xbf16, #tpu.memory_space<vmem>>, %arg3: memref<32x20xbf16, #tpu.memory_space<vmem>>, %arg4: memref<1x32x256xf32, #tpu.memory_space<vmem>>) attributes {dimension_semantics = [#tpu.dimension_semantics<parallel>], iteration_bounds = array<i64: 2>, scalar_prefetch = 0 : i64, scratch_operands = 0 : i64, tpu.core_type = #tpu.core_type<tc>, window_params = [{transform_indices = @transform_0, window_bounds = array<i64: 1, 4, 256>}, {pipeline_mode = #tpu.pipeline_mode<synchronous>, transform_indices = @transform_1, window_bounds = array<i64: 4, 36>}, {pipeline_mode = #tpu.pipeline_mode<synchronous>, transform_indices = @transform_2, window_bounds = array<i64: 32, 20>}, {transform_indices = @transform_3, window_bounds = array<i64: 1, 32, 256>}]} {
    %0 = tpu.iota {dimensions = array<i32: 1>} : vector<4x256xi32>
    %c16_i32 = arith.constant 16 : i32
    %c0_i32 = arith.constant 0 : i32
    %1 = arith.cmpi eq, %c16_i32, %c0_i32 : i32
    %c1_i32 = arith.constant 1 : i32
    %2 = arith.select %1, %c1_i32, %c16_i32 : i32
    %3 = vector.broadcast %2 : i32 to vector<4x256xi32>
    %4 = arith.remsi %0, %3 : vector<4x256xi32>
    %c0_i32_0 = arith.constant 0 : i32
    %5 = vector.broadcast %c0_i32_0 : i32 to vector<4x256xi32>
    %6 = arith.cmpi ne, %4, %5 : vector<4x256xi32>
    %c0_i32_1 = arith.constant 0 : i32
    %7 = vector.broadcast %c0_i32_1 : i32 to vector<4x256xi32>
    %8 = arith.cmpi slt, %4, %7 : vector<4x256xi32>
    %c0_i32_2 = arith.constant 0 : i32
    %9 = arith.cmpi slt, %2, %c0_i32_2 : i32
    %10 = vector.broadcast %9 : i1 to vector<4x256xi1>
    %11 = vector.broadcast %10 : vector<4x256xi1> to vector<4x256xi1>
    %12 = arith.xori %8, %11 : vector<4x256xi1>
    %13 = arith.andi %12, %6 : vector<4x256xi1>
    %14 = vector.broadcast %2 : i32 to vector<4x256xi32>
    %15 = arith.addi %4, %14 : vector<4x256xi32>
    %16 = arith.select %13, %15, %4 : vector<4x256xi1>, vector<4x256xi32>
    %c0_i32_3 = arith.constant 0 : i32
    %17 = vector.broadcast %c0_i32_3 : i32 to vector<4x256xi32>
    %18 = arith.cmpi eq, %16, %17 : vector<4x256xi32>
    %c15_i32 = arith.constant 15 : i32
    %19 = vector.broadcast %c15_i32 : i32 to vector<4x256xi32>
    %20 = arith.cmpi eq, %16, %19 : vector<4x256xi32>
    %c0 = arith.constant 0 : index
    %c0_4 = arith.constant 0 : index
    %c0_5 = arith.constant 0 : index
    %21 = vector.load %arg1[%c0, %c0_4, %c0_5] : memref<1x4x256xbf16, #tpu.memory_space<vmem>>, vector<1x4x256xbf16>
    %22 = vector.shape_cast %21 : vector<1x4x256xbf16> to vector<4x256xbf16>
    %23 = arith.extf %22 : vector<4x256xbf16> to vector<4x256xf32>
    %cst = arith.constant 0.000000e+00 : f32
    %24 = vector.broadcast %cst : f32 to vector<4x17xf32>
    %25 = vector.extract_strided_slice %23 {offsets = [0, 0], sizes = [4, 239], strides = [1, 1]} : vector<4x256xf32> to vector<4x239xf32>
    %26 = tpu.concatenate %24, %25 in 1 : vector<4x17xf32>, vector<4x239xf32> -> vector<4x256xf32>
    %cst_6 = arith.constant 0.000000e+00 : f32
    %27 = vector.broadcast %cst_6 : f32 to vector<4x256xf32>
    %28 = arith.select %18, %27, %26 : vector<4x256xi1>, vector<4x256xf32>
    %cst_7 = arith.constant 0.000000e+00 : f32
    %29 = vector.broadcast %cst_7 : f32 to vector<4x16xf32>
    %30 = vector.extract_strided_slice %23 {offsets = [0, 0], sizes = [4, 240], strides = [1, 1]} : vector<4x256xf32> to vector<4x240xf32>
    %31 = tpu.concatenate %29, %30 in 1 : vector<4x16xf32>, vector<4x240xf32> -> vector<4x256xf32>
    %cst_8 = arith.constant 0.000000e+00 : f32
    %32 = vector.broadcast %cst_8 : f32 to vector<4x15xf32>
    %33 = vector.extract_strided_slice %23 {offsets = [0, 0], sizes = [4, 241], strides = [1, 1]} : vector<4x256xf32> to vector<4x241xf32>
    %34 = tpu.concatenate %32, %33 in 1 : vector<4x15xf32>, vector<4x241xf32> -> vector<4x256xf32>
    %cst_9 = arith.constant 0.000000e+00 : f32
    %35 = vector.broadcast %cst_9 : f32 to vector<4x256xf32>
    %36 = arith.select %20, %35, %34 : vector<4x256xi1>, vector<4x256xf32>
    %cst_10 = arith.constant 0.000000e+00 : f32
    %37 = vector.broadcast %cst_10 : f32 to vector<4x1xf32>
    %38 = vector.extract_strided_slice %23 {offsets = [0, 0], sizes = [4, 255], strides = [1, 1]} : vector<4x256xf32> to vector<4x255xf32>
    %39 = tpu.concatenate %37, %38 in 1 : vector<4x1xf32>, vector<4x255xf32> -> vector<4x256xf32>
    %cst_11 = arith.constant 0.000000e+00 : f32
    %40 = vector.broadcast %cst_11 : f32 to vector<4x256xf32>
    %41 = arith.select %18, %40, %39 : vector<4x256xi1>, vector<4x256xf32>
    %42 = vector.extract_strided_slice %23 {offsets = [0, 1], sizes = [4, 255], strides = [1, 1]} : vector<4x256xf32> to vector<4x255xf32>
    %cst_12 = arith.constant 0.000000e+00 : f32
    %43 = vector.broadcast %cst_12 : f32 to vector<4x1xf32>
    %44 = tpu.concatenate %42, %43 in 1 : vector<4x255xf32>, vector<4x1xf32> -> vector<4x256xf32>
    %cst_13 = arith.constant 0.000000e+00 : f32
    %45 = vector.broadcast %cst_13 : f32 to vector<4x256xf32>
    %46 = arith.select %20, %45, %44 : vector<4x256xi1>, vector<4x256xf32>
    %47 = vector.extract_strided_slice %23 {offsets = [0, 15], sizes = [4, 241], strides = [1, 1]} : vector<4x256xf32> to vector<4x241xf32>
    %cst_14 = arith.constant 0.000000e+00 : f32
    %48 = vector.broadcast %cst_14 : f32 to vector<4x15xf32>
    %49 = tpu.concatenate %47, %48 in 1 : vector<4x241xf32>, vector<4x15xf32> -> vector<4x256xf32>
    %cst_15 = arith.constant 0.000000e+00 : f32
    %50 = vector.broadcast %cst_15 : f32 to vector<4x256xf32>
    %51 = arith.select %18, %50, %49 : vector<4x256xi1>, vector<4x256xf32>
    %52 = vector.extract_strided_slice %23 {offsets = [0, 16], sizes = [4, 240], strides = [1, 1]} : vector<4x256xf32> to vector<4x240xf32>
    %cst_16 = arith.constant 0.000000e+00 : f32
    %53 = vector.broadcast %cst_16 : f32 to vector<4x16xf32>
    %54 = tpu.concatenate %52, %53 in 1 : vector<4x240xf32>, vector<4x16xf32> -> vector<4x256xf32>
    %55 = vector.extract_strided_slice %23 {offsets = [0, 17], sizes = [4, 239], strides = [1, 1]} : vector<4x256xf32> to vector<4x239xf32>
    %cst_17 = arith.constant 0.000000e+00 : f32
    %56 = vector.broadcast %cst_17 : f32 to vector<4x17xf32>
    %57 = tpu.concatenate %55, %56 in 1 : vector<4x239xf32>, vector<4x17xf32> -> vector<4x256xf32>
    %cst_18 = arith.constant 0.000000e+00 : f32
    %58 = vector.broadcast %cst_18 : f32 to vector<4x256xf32>
    %59 = arith.select %20, %58, %57 : vector<4x256xi1>, vector<4x256xf32>
    %60 = tpu.concatenate %28, %31, %36, %41, %23, %46, %51, %54, %59 in 0 : vector<4x256xf32>, vector<4x256xf32>, vector<4x256xf32>, vector<4x256xf32>, vector<4x256xf32>, vector<4x256xf32>, vector<4x256xf32>, vector<4x256xf32>, vector<4x256xf32> -> vector<36x256xf32>
    %61 = arith.truncf %60 : vector<36x256xf32> to vector<36x256xbf16>
    %c0_19 = arith.constant 0 : index
    %c0_20 = arith.constant 0 : index
    %62 = vector.load %arg2[%c0_19, %c0_20] : memref<4x36xbf16, #tpu.memory_space<vmem>>, vector<4x36xbf16>
    %cst_21 = arith.constant dense<0.000000e+00> : vector<4x256xf32>
    %63 = tpu.matmul %62, %61, %cst_21 {dimension_numbers = #tpu.dot_dimension_numbers<[1], [0], [0], [1], [0, 0, 1, 1], [], []>} : vector<4x36xbf16>, vector<36x256xbf16>, vector<4x256xf32> -> vector<4x256xf32>
    %cst_22 = arith.constant 0.000000e+00 : f32
    %64 = vector.broadcast %cst_22 : f32 to vector<4x256xf32>
    %65 = arith.maximumf %63, %64 : vector<4x256xf32>
    %66 = vector.extract_strided_slice %65 {offsets = [0, 1], sizes = [4, 255], strides = [1, 1]} : vector<4x256xf32> to vector<4x255xf32>
    %cst_23 = arith.constant 0.000000e+00 : f32
    %67 = vector.broadcast %cst_23 : f32 to vector<4x1xf32>
    %68 = tpu.concatenate %66, %67 in 1 : vector<4x255xf32>, vector<4x1xf32> -> vector<4x256xf32>
    %cst_24 = arith.constant 0.000000e+00 : f32
    %69 = vector.broadcast %cst_24 : f32 to vector<4x256xf32>
    %70 = arith.select %20, %69, %68 : vector<4x256xi1>, vector<4x256xf32>
    %71 = vector.extract_strided_slice %65 {offsets = [0, 16], sizes = [4, 240], strides = [1, 1]} : vector<4x256xf32> to vector<4x240xf32>
    %cst_25 = arith.constant 0.000000e+00 : f32
    %72 = vector.broadcast %cst_25 : f32 to vector<4x16xf32>
    %73 = tpu.concatenate %71, %72 in 1 : vector<4x240xf32>, vector<4x16xf32> -> vector<4x256xf32>
    %74 = vector.extract_strided_slice %65 {offsets = [0, 17], sizes = [4, 239], strides = [1, 1]} : vector<4x256xf32> to vector<4x239xf32>
    %cst_26 = arith.constant 0.000000e+00 : f32
    %75 = vector.broadcast %cst_26 : f32 to vector<4x17xf32>
    %76 = tpu.concatenate %74, %75 in 1 : vector<4x239xf32>, vector<4x17xf32> -> vector<4x256xf32>
    %cst_27 = arith.constant 0.000000e+00 : f32
    %77 = vector.broadcast %cst_27 : f32 to vector<4x256xf32>
    %78 = arith.select %20, %77, %76 : vector<4x256xi1>, vector<4x256xf32>
    %79 = tpu.concatenate %65, %70, %73, %78, %23 in 0 : vector<4x256xf32>, vector<4x256xf32>, vector<4x256xf32>, vector<4x256xf32>, vector<4x256xf32> -> vector<20x256xf32>
    %80 = arith.truncf %79 : vector<20x256xf32> to vector<20x256xbf16>
    %c0_28 = arith.constant 0 : index
    %c0_29 = arith.constant 0 : index
    %81 = vector.load %arg3[%c0_28, %c0_29] : memref<32x20xbf16, #tpu.memory_space<vmem>>, vector<32x20xbf16>
    %cst_30 = arith.constant dense<0.000000e+00> : vector<32x256xf32>
    %82 = tpu.matmul %81, %80, %cst_30 {dimension_numbers = #tpu.dot_dimension_numbers<[1], [0], [0], [1], [0, 0, 1, 1], [], []>} : vector<32x20xbf16>, vector<20x256xbf16>, vector<32x256xf32> -> vector<32x256xf32>
    %cst_31 = arith.constant 0.000000e+00 : f32
    %83 = vector.broadcast %cst_31 : f32 to vector<32x256xf32>
    %84 = arith.maximumf %82, %83 : vector<32x256xf32>
    %c0_32 = arith.constant 0 : index
    %c0_33 = arith.constant 0 : index
    %c0_34 = arith.constant 0 : index
    %85 = vector.load %arg4[%c0_32, %c0_33, %c0_34] : memref<1x32x256xf32, #tpu.memory_space<vmem>>, vector<1x32x256xf32>
    %86 = vector.shape_cast %85 : vector<1x32x256xf32> to vector<32x256xf32>
    %87 = vector.shape_cast %84 : vector<32x256xf32> to vector<1x32x256xf32>
    tpu.vector_store %arg4[%c0_32, %c0_33, %c0_34], %87 {strides = array<i32>} : memref<1x32x256xf32, #tpu.memory_space<vmem>>, vector<1x32x256xf32>,
    return
  }
  func.func @transform_0(%arg0: i32) -> (i32, i32, i32) {
    %c0_i32 = arith.constant 0 : i32
    %c0_i32_0 = arith.constant 0 : i32
    %c0_i32_1 = arith.constant 0 : i32
    return %arg0, %c0_i32, %c0_i32_0 : i32, i32, i32
  }
  func.func @transform_1(%arg0: i32) -> (i32, i32) {
    %c0_i32 = arith.constant 0 : i32
    %c0_i32_0 = arith.constant 0 : i32
    %c0_i32_1 = arith.constant 0 : i32
    return %c0_i32, %c0_i32_0 : i32, i32
  }
  func.func @transform_2(%arg0: i32) -> (i32, i32) {
    %c0_i32 = arith.constant 0 : i32
    %c0_i32_0 = arith.constant 0 : i32
    %c0_i32_1 = arith.constant 0 : i32
    return %c0_i32, %c0_i32_0 : i32, i32
  }
  func.func @transform_3(%arg0: i32) -> (i32, i32, i32) {
    %c0_i32 = arith.constant 0 : i32
    %c0_i32_0 = arith.constant 0 : i32
    %c0_i32_1 = arith.constant 0 : i32
    return %arg0, %c0_i32, %c0_i32_0 : i32, i32, i32
  }
}

</mosaic_0001>

<llo_original>
// kernel: tpu_custom_call.1
$region0: #{tpu_custom_call.1}
  #allocation0 [shape = 'u32[]', space=smem, size = 0x4, offset = 0x4, fixed_abs, tag = 'smem constant byte address 0x4 - core index']
  #allocation1 [shape = 'u32[72,128]{1,0:T(1,128)}', space=vmem, size = 0x9000, scoped, tag = 'internal scratch']
  %s0 = inlined_call_operand.vmem [shape: bf16[2,4,256], index: 0, kind: input, shape index: {}]
  %s1 = inlined_call_operand.vmem [shape: bf16[4,36], index: 1, kind: input, shape index: {}]
  %s2 = inlined_call_operand.vmem [shape: bf16[32,20], index: 2, kind: input, shape index: {}]
  %s3 = inlined_call_operand.hbm [shape: f32[2,32,256], index: 3, kind: output, shape index: {}]
  %s4 = sld [smem:[#allocation0]]
  $region45: #{tpu_custom_call.1} parent=0
    _
  %s6 = ssub.s32 1, %s4
  %s7 = scalar_select 0, %s6, %s4
  $region1: #{tpu_custom_call.1} parent=0
    #allocation2 [shape = 'u8[65536]{0}', space=vmem, size = 0x10000, scoped, tag = 'output window, operand 0']
    #allocation3 [shape = 's32[2]{0}', space=sflag, size = 0x8, scoped, tag = 'scoped memory for tpu_custom_call.1']
    %8 = vsyncpa [#allocation3], 0
    %s9 = scalar_lea.sflag [#allocation3], 1
    %10 = vsyncpa %s9, 0
    loop: start=0, step=1, limit=4
    $region2: #{tpu_custom_call.1} parent=1 // loop_pre_header
      _
    $region3: #{tpu_custom_call.1} parent=1 // loop_header
      %s12 = sphi 0, %s16
      %p13 = scmp.ge.s32.totalorder %s12, 4
      %s22 = sphi 0, %s24
      %s25 = sphi 0, %s22
      %s26 = sphi 0, %s25
      %s42 = sphi 0, %s26
      %s46 = sphi 0, %s46
      %s48 = sphi 0, %s46
      %s49 = sphi 0, %s48
      %s63 = sphi 0, %s49
      %s67 = sphi 0, %s67
      %s69 = sphi 0, %s67
      %s70 = sphi 0, %s69
      %s84 = sphi 0, %s70
      %s90 = sphi 0, %s92
      %s93 = sphi 0, %s90
      %s94 = sphi 0, %s93
      %s110 = sphi 0, %s94
    $region4: #{tpu_custom_call.1} parent=1 // loop_header_branch
      %15 = sbr.rel (%p13) target = $region8
    $region5: #{tpu_custom_call.1} parent=1 // loop_body
      %s17 = ssub.s32 %s12, 1
      %s18 = ssub.s32 %s12, 2
      %s19 = sadd.s32 %s12, 1
      %s20 = ssub.s32 %s12, %s19
      %p21 = scmp.eq.s32.totalorder %s20, 0
      %s23 = sadd.s32 %s22, 1
      %s24 = scalar_select %p21, %s22, %s23
      %p27 = pneg %p21
      %p28 = scmp.eq.s32.totalorder %s12, 1
      %p29 = por %p27, %p28
      %p30 = scmp.ne.s32.totalorder %s22, %s25
      %p31 = scmp.eq.s32.totalorder %s12, 0
      %p32 = por %p30, %p31
      %p33 = scmp.ne.s32.totalorder %s22, %s25
      %p34 = scmp.eq.s32.totalorder %s17, 1
      %p35 = por %p33, %p34
      %p36 = scmp.ne.s32.totalorder %s25, %s26
      %p37 = scmp.eq.s32.totalorder %s17, 0
      %p38 = por %p36, %p37
      %p39 = scmp.ne.s32.totalorder %s25, %s26
      %p40 = scmp.eq.s32.totalorder %s18, 1
      %p41 = por %p39, %p40
      %p43 = scmp.ne.s32.totalorder %s26, %s42
      %p44 = scmp.eq.s32.totalorder %s18, 0
      %p45 = por %p43, %p44
      %s47 = sadd.s32 %s46, 1
      %p50 = scmp.eq.s32.totalorder %s12, 1
      %p51 = scmp.ne.s32.totalorder %s46, %s48
      %p52 = scmp.eq.s32.totalorder %s12, 0
      %p53 = por %p51, %p52
      %p54 = scmp.ne.s32.totalorder %s46, %s48
      %p55 = scmp.eq.s32.totalorder %s17, 1
      %p56 = por %p54, %p55
      %p57 = scmp.ne.s32.totalorder %s48, %s49
      %p58 = scmp.eq.s32.totalorder %s17, 0
      %p59 = por %p57, %p58
      %p60 = scmp.ne.s32.totalorder %s48, %s49
      %p61 = scmp.eq.s32.totalorder %s18, 1
      %p62 = por %p60, %p61
      %p64 = scmp.ne.s32.totalorder %s49, %s63
      %p65 = scmp.eq.s32.totalorder %s18, 0
      %p66 = por %p64, %p65
      %s68 = sadd.s32 %s67, 1
      %p71 = scmp.eq.s32.totalorder %s12, 1
      %p72 = scmp.ne.s32.totalorder %s67, %s69
      %p73 = scmp.eq.s32.totalorder %s12, 0
      %p74 = por %p72, %p73
      %p75 = scmp.ne.s32.totalorder %s67, %s69
      %p76 = scmp.eq.s32.totalorder %s17, 1
      %p77 = por %p75, %p76
      %p78 = scmp.ne.s32.totalorder %s69, %s70
      %p79 = scmp.eq.s32.totalorder %s17, 0
      %p80 = por %p78, %p79
      %p81 = scmp.ne.s32.totalorder %s69, %s70
      %p82 = scmp.eq.s32.totalorder %s18, 1
      %p83 = por %p81, %p82
      %p85 = scmp.ne.s32.totalorder %s70, %s84
      %p86 = scmp.eq.s32.totalorder %s18, 0
      %p87 = por %p85, %p86
      %s88 = ssub.s32 %s12, %s19
      %p89 = scmp.eq.s32.totalorder %s88, 0
      %s91 = sadd.s32 %s90, 1
      %s92 = scalar_select %p89, %s90, %s91
      %p95 = pneg %p89
      %p96 = scmp.eq.s32.totalorder %s12, 1
      %p97 = por %p95, %p96
      %p98 = scmp.ne.s32.totalorder %s90, %s93
      %p99 = scmp.eq.s32.totalorder %s12, 0
      %p100 = por %p98, %p99
      %p101 = scmp.ne.s32.totalorder %s90, %s93
      %p102 = scmp.eq.s32.totalorder %s17, 1
      %p103 = por %p101, %p102
      %p104 = scmp.ne.s32.totalorder %s93, %s94
      %p105 = scmp.eq.s32.totalorder %s17, 0
      %p106 = por %p104, %p105
      %p107 = scmp.ne.s32.totalorder %s93, %s94
      %p108 = scmp.eq.s32.totalorder %s18, 1
      %p109 = por %p107, %p108
      %p111 = scmp.ne.s32.totalorder %s94, %s110
      %p112 = scmp.eq.s32.totalorder %s18, 0
      %p113 = por %p111, %p112
      %p114 = scmp.le.s32.totalorder 1, %s12
      %p115 = scmp.lt.s32.totalorder %s12, 3
      %p116 = pnand %p114, %p115
      %p117 = pneg %p116
      // Predicated region
      $region9: #{tpu_custom_call.1} parent=5 // pred_check
        _
      $region10: #{tpu_custom_call.1} parent=5 // pred_check_branch
        %119 = sbr.rel (%p116) target = $region12
      $region11: #{tpu_custom_call.1} parent=5 // pred_region
        %s120 = ssub.s32 %s12, 1
        // Predicated region
        $region13: #{tpu_custom_call.1} parent=11 // pred_check
          %p121 = pneg %p59
        $region14: #{tpu_custom_call.1} parent=11 // pred_check_branch
          %123 = sbr.rel (%p121) target = $region16
        $region15: #{tpu_custom_call.1} parent=11 // pred_region
          _
        $region16: #{tpu_custom_call.1} parent=11 // pred_fallthru
          _
        // Predicated region
        $region17: #{tpu_custom_call.1} parent=11 // pred_check
          %p124 = pneg %p80
        $region18: #{tpu_custom_call.1} parent=11 // pred_check_branch
          %126 = sbr.rel (%p124) target = $region20
        $region19: #{tpu_custom_call.1} parent=11 // pred_region
          _
        $region20: #{tpu_custom_call.1} parent=11 // pred_fallthru
          _
      $region12: #{tpu_custom_call.1} parent=5 // pred_fallthru
        _
      %p127 = scmp.lt.s32.totalorder %s12, 2
      // Predicated region
      $region21: #{tpu_custom_call.1} parent=5 // pred_check
        %p128 = pneg %p127
      $region22: #{tpu_custom_call.1} parent=5 // pred_check_branch
        %130 = sbr.rel (%p128) target = $region24
      $region23: #{tpu_custom_call.1} parent=5 // pred_region
        // Predicated region
        $region25: #{tpu_custom_call.1} parent=23 // pred_check
          %p131 = pneg %p32
        $region26: #{tpu_custom_call.1} parent=23 // pred_check_branch
          %133 = sbr.rel (%p131) target = $region28
        $region27: #{tpu_custom_call.1} parent=23 // pred_region
          %p134 = scmp.lt.s32.totalorder %s12, 1
          %s135 = scalar_select %p134, %s12, 1
          %s136 = smul.addr %s135, 2
          %s137 = smul.addr %s136, 2
          %s138 = scalar_lea.vmem %s0, %s137
        $region28: #{tpu_custom_call.1} parent=23 // pred_fallthru
          _
      $region24: #{tpu_custom_call.1} parent=5 // pred_fallthru
        _
      %p139 = scmp.le.s32.totalorder 1, %s12
      %p140 = scmp.lt.s32.totalorder %s12, 3
      %p141 = pnand %p139, %p140
      %p142 = pneg %p141
      // Predicated region
      $region29: #{tpu_custom_call.1} parent=5 // pred_check
        _
      $region30: #{tpu_custom_call.1} parent=5 // pred_check_branch
        %144 = sbr.rel (%p141) target = $region32
      $region31: #{tpu_custom_call.1} parent=5 // pred_region
        %s145 = ssub.s32 %s12, 1
        %p146 = scmp.lt.s32.totalorder %s17, 1
        %s147 = scalar_select %p146, %s17, 1
        %s148 = smul.addr %s147, 2
        %s149 = smul.addr %s148, 2
        %s150 = scalar_lea.vmem %s0, %s149
        %p151 = pneg %p38
        %p152 = pneg %p35
        %p153 = pneg %p59
        %p154 = pneg %p56
        %p155 = pneg %p80
        %p156 = pneg %p77
        %p157 = pneg %p106
        %p158 = pneg %p103
        %s159 = sand.u32 %s93, 1
        %s160 = scalar_lea.sflag [#allocation3], %s159
        %s161 = sand.u32 %s93, 1
        %s162 = smul.addr %s161, 64
        %s163 = scalar_lea.vmem [#allocation2], %s162
        %p164 = scmp.lt.s32.totalorder %s17, 1
        %s165 = scalar_select %p164, %s17, 1
        %s166 = smul.addr %s165, 2
        %s167 = smul.addr %s166, 2
        %s168 = scalar_lea.vmem %s0, %s167
        %v170 = vlaneseq
        %v171 = vand.u32 %v170, 127
        %v172 = vadd.s32 %v171, 128
        %vm173 = vcmp.lt.s32.totalorder %v171, 0
        %v174 = vsub.s32 0, %v171
        %v175 = vsel %vm173, %v174, %v171
        %v176 = vshrl.u32 %v175, 4
        %v177 = vand.u32 %v175, 15
        %v178 = vsub.s32 0, %v177
        %v179 = vsel %vm173, %v178, %v177
        %vm180 = vcmp.lt.s32.totalorder %v172, 0
        %v181 = vsub.s32 0, %v172
        %v182 = vsel %vm180, %v181, %v172
        %v183 = vshrl.u32 %v182, 4
        %v184 = vand.u32 %v182, 15
        %v185 = vsub.s32 0, %v184
        %v186 = vsel %vm180, %v185, %v184
        %vm187 = vcmp.ne.s32.totalorder %v179, 0
        %vm188 = vcmp.ne.s32.totalorder %v186, 0
        %vm189 = vcmp.lt.s32.totalorder %v179, 0
        %vm190 = vcmp.lt.s32.totalorder %v186, 0
        %vm191 = vmand %vm189, %vm187
        %vm192 = vmand %vm190, %vm188
        %v193 = vadd.s32 %v179, 16
        %v194 = vadd.s32 %v186, 16
        %v195 = vsel %vm191, %v193, %v179
        %v196 = vsel %vm192, %v194, %v186
        %vm197 = vcmp.eq.s32.totalorder %v195, 0
        %vm198 = vcmp.eq.s32.totalorder %v196, 0
        %vm199 = vcmp.eq.s32.totalorder %v195, 15
        %vm200 = vcmp.eq.s32.totalorder %v196, 15
        %v201 = vld [vmem:[%s168] sm:$0xf]
        %v202 = vunpack.c.l.bf16 %v201
        %204 = vst [vmem:[#allocation1] ss:$2 sm:$0xff] %v202
        %v205 = vld.sshfl [vmem:[#allocation1] sm:$0xff pattern:$0x75316420]
        %v206 = vld.sshfl [vmem:[#allocation1 + $0x8] sm:$0xff pattern:$0x75316420]
        %207 = vrot.lane.b32.xlu0 %v205, 17
        %v208 = vpop.permute.xlu0 %207
        %209 = vrot.lane.b32.xlu0 %v206, 17
        %v210 = vpop.permute.xlu0 %209
        %vm211 = vcmask 138240
        %v212 = vsel %vm211, %v208, %v210
        %v215 = vsel %vm211, 0.0, %v208
        %v216 = vsel %vm197, 0.0, %v215
        %v217 = vsel %vm198, 0.0, %v212
        %218 = vst [vmem:[#allocation1] ss:$2 sm:$0xff] %v202
        %v219 = vld.sshfl [vmem:[#allocation1] sm:$0xff pattern:$0x75316420]
        %v220 = vld.sshfl [vmem:[#allocation1 + $0x8] sm:$0xff pattern:$0x75316420]
        %221 = vrot.lane.b32.xlu0 %v219, 16
        %v222 = vpop.permute.xlu0 %221
        %223 = vrot.lane.b32.xlu0 %v220, 16
        %v224 = vpop.permute.xlu0 %223
        %vm225 = vcmask 130048
        %v226 = vsel %vm225, %v222, %v224
        %v228 = vsel %vm225, 0.0, %v222
        %229 = vst [vmem:[#allocation1] ss:$2 sm:$0xff] %v202
        %v230 = vld.sshfl [vmem:[#allocation1] sm:$0xff pattern:$0x75316420]
        %v231 = vld.sshfl [vmem:[#allocation1 + $0x8] sm:$0xff pattern:$0x75316420]
        %232 = vrot.lane.b32.xlu0 %v230, 15
        %v233 = vpop.permute.xlu0 %232
        %234 = vrot.lane.b32.xlu0 %v231, 15
        %v235 = vpop.permute.xlu0 %234
        %vm236 = vcmask 121856
        %v237 = vsel %vm236, %v233, %v235
        %v240 = vsel %vm236, 0.0, %v233
        %v241 = vsel %vm199, 0.0, %v240
        %v242 = vsel %vm200, 0.0, %v237
        %243 = vst [vmem:[#allocation1] ss:$2 sm:$0xff] %v202
        %v244 = vld.sshfl [vmem:[#allocation1] sm:$0xff pattern:$0x75316420]
        %v245 = vld.sshfl [vmem:[#allocation1 + $0x8] sm:$0xff pattern:$0x75316420]
        %246 = vrot.lane.b32.xlu0 %v244, 1
        %v247 = vpop.permute.xlu0 %246
        %248 = vrot.lane.b32.xlu0 %v245, 1
        %v249 = vpop.permute.xlu0 %248
        %vm250 = vcmask 7168
        %v251 = vsel %vm250, %v247, %v249
        %v254 = vsel %vm250, 0.0, %v247
        %v255 = vsel %vm197, 0.0, %v254
        %v256 = vsel %vm198, 0.0, %v251
        %257 = vst [vmem:[#allocation1] ss:$2 sm:$0xff] %v202
        %v258 = vld.sshfl [vmem:[#allocation1] sm:$0xff pattern:$0x75316420]
        %v259 = vld.sshfl [vmem:[#allocation1 + $0x8] sm:$0xff pattern:$0x75316420]
        %260 = vrot.lane.b32.xlu0 %v258, 127
        %v261 = vpop.permute.xlu0 %260
        %262 = vrot.lane.b32.xlu0 %v259, 127
        %v263 = vpop.permute.xlu0 %262
        %vm264 = vcmask 1039360
        %v265 = vsel %vm264, %v261, %v263
        %v268 = vsel %vm264, %v263, 0.0
        %v269 = vsel %vm199, 0.0, %v265
        %v270 = vsel %vm200, 0.0, %v268
        %271 = vst [vmem:[#allocation1] ss:$2 sm:$0xff] %v202
        %v272 = vld.sshfl [vmem:[#allocation1] sm:$0xff pattern:$0x75316420]
        %v273 = vld.sshfl [vmem:[#allocation1 + $0x8] sm:$0xff pattern:$0x75316420]
        %274 = vrot.lane.b32.xlu0 %v272, 113
        %v275 = vpop.permute.xlu0 %274
        %276 = vrot.lane.b32.xlu0 %v273, 113
        %v277 = vpop.permute.xlu0 %276
        %vm278 = vcmask 924672
        %v279 = vsel %vm278, %v275, %v277
        %v282 = vsel %vm278, %v277, 0.0
        %v283 = vsel %vm197, 0.0, %v279
        %v284 = vsel %vm198, 0.0, %v282
        %285 = vst [vmem:[#allocation1] ss:$2 sm:$0xff] %v202
        %v286 = vld.sshfl [vmem:[#allocation1] sm:$0xff pattern:$0x75316420]
        %v287 = vld.sshfl [vmem:[#allocation1 + $0x8] sm:$0xff pattern:$0x75316420]
        %288 = vrot.lane.b32.xlu0 %v286, 112
        %v289 = vpop.permute.xlu0 %288
        %290 = vrot.lane.b32.xlu0 %v287, 112
        %v291 = vpop.permute.xlu0 %290
        %vm292 = vcmask 916480
        %v293 = vsel %vm292, %v289, %v291
        %v295 = vsel %vm292, %v291, 0.0
        %296 = vst [vmem:[#allocation1] ss:$2 sm:$0xff] %v202
        %v297 = vld.sshfl [vmem:[#allocation1] sm:$0xff pattern:$0x75316420]
        %v298 = vld.sshfl [vmem:[#allocation1 + $0x8] sm:$0xff pattern:$0x75316420]
        %299 = vrot.lane.b32.xlu0 %v297, 111
        %v300 = vpop.permute.xlu0 %299
        %301 = vrot.lane.b32.xlu0 %v298, 111
        %v302 = vpop.permute.xlu0 %301
        %vm303 = vcmask 908288
        %v304 = vsel %vm303, %v300, %v302
        %v307 = vsel %vm303, %v302, 0.0
        %v308 = vsel %vm199, 0.0, %v304
        %v309 = vsel %vm200, 0.0, %v307
        %v311 = vrot.slane %v228, 4
        %v312 = vrot.slane %v226, 4
        %v317 = vrot.slane %v255, 4
        %v318 = vrot.slane %v256, 4
        %321 = vst [vmem:[#allocation1] ss:$2 sm:$0xff] %v202
        %v322 = vld.sshfl [vmem:[#allocation1] sm:$0xff pattern:$0x75316420]
        %v323 = vld.sshfl [vmem:[#allocation1 + $0x8] sm:$0xff pattern:$0x75316420]
        %v328 = vrot.slane %v269, 4
        %v329 = vrot.slane %v270, 4
        %v333 = vrot.slane %v293, 4
        %v334 = vrot.slane %v295, 4
        %vm337 = vcmask 1043456
        %v338 = vsel %vm337, %v216, %v311
        %v339 = vsel %vm337, %v217, %v312
        %v340 = vsel %vm337, %v241, %v317
        %v341 = vsel %vm337, %v242, %v318
        %v342 = vsel %vm337, %v322, %v328
        %v343 = vsel %vm337, %v323, %v329
        %v344 = vsel %vm337, %v283, %v333
        %v345 = vsel %vm337, %v284, %v334
        %v346 = vpack.c.bf16 %v340, %v338
        %v347 = vpack.c.bf16 %v341, %v339
        %v348 = vpack.c.bf16 %v344, %v342
        %v349 = vpack.c.bf16 %v345, %v343
        %v350 = vpack.c.bf16 %v308, %v308
        %v351 = vpack.c.bf16 %v309, %v309
        %v352 = vld [vmem:[%s1] sm:$0x3]
        %vm353 = vcmask 293888
        %v355 = vsel %vm353, %v352, 0
        %vm357 = vcmask 1041408
        %v359 = vsel %vm357, %v350, 0
        %v362 = vsel %vm357, %v351, 0
        %364 = vmatpush.bf16.msra.mxu0 0
        %365 = vmatpush.bf16.msra.mxu0 0
        %366 = vmatpush.bf16.msra.mxu0 0
        %367 = vmatpush.bf16.msra.mxu0 0
        %368 = vmatpush.bf16.msra.mxu0 0
        %369 = vmatpush.bf16.msra.mxu0 %v359
        %370 = vmatpush.bf16.msra.mxu0 %v348
        %371 = vmatpush.bf16.msra.mxu0 %v346
        %372 = vmatmul.bf16.gmra.mxu0 %v355
        %v373 = vpop.f32.mrf.mxu0
        %v374 = vadd.f32 0.0, %v373
        %v375 = vpop.f32.mrf.mxu0
        %376 = vdwg.mxu0
        %377 = vmatpush.bf16.msra.mxu0 0
        %378 = vmatpush.bf16.msra.mxu0 0
        %379 = vmatpush.bf16.msra.mxu0 0
        %380 = vmatpush.bf16.msra.mxu0 0
        %381 = vmatpush.bf16.msra.mxu0 0
        %382 = vmatpush.bf16.msra.mxu0 %v362
        %383 = vmatpush.bf16.msra.mxu0 %v349
        %384 = vmatpush.bf16.msra.mxu0 %v347
        %385 = vmatmul.bf16.gmra.mxu0 %v355
        %v386 = vpop.f32.mrf.mxu0
        %v387 = vadd.f32 0.0, %v386
        %v388 = vpop.f32.mrf.mxu0
        %389 = vdwg.mxu0
        %v390 = vmax.f32 %v374, 0.0
        %v391 = vmax.f32 %v387, 0.0
        %394 = vrot.lane.b32.xlu0 %v390, 127
        %v395 = vpop.permute.xlu0 %394
        %396 = vrot.lane.b32.xlu0 %v391, 127
        %v397 = vpop.permute.xlu0 %396
        %v398 = vsel %vm264, %v395, %v397
        %v401 = vsel %vm264, %v397, 0.0
        %v402 = vsel %vm199, 0.0, %v398
        %v403 = vsel %vm200, 0.0, %v401
        %404 = vrot.lane.b32.xlu0 %v390, 112
        %v405 = vpop.permute.xlu0 %404
        %406 = vrot.lane.b32.xlu0 %v391, 112
        %v407 = vpop.permute.xlu0 %406
        %v408 = vsel %vm292, %v405, %v407
        %v411 = vsel %vm292, %v407, 0.0
        %412 = vrot.lane.b32.xlu0 %v390, 111
        %v413 = vpop.permute.xlu0 %412
        %414 = vrot.lane.b32.xlu0 %v391, 111
        %v415 = vpop.permute.xlu0 %414
        %v416 = vsel %vm303, %v413, %v415
        %v419 = vsel %vm303, %v415, 0.0
        %v420 = vsel %vm199, 0.0, %v416
        %v421 = vsel %vm200, 0.0, %v419
        %v424 = vrot.slane %v402, 4
        %v425 = vrot.slane %v403, 4
        %v430 = vrot.slane %v420, 4
        %v431 = vrot.slane %v421, 4
        %434 = vst [vmem:[#allocation1] ss:$2 sm:$0xff] %v202
        %v435 = vld.sshfl [vmem:[#allocation1] sm:$0xff pattern:$0x75316420]
        %v436 = vld.sshfl [vmem:[#allocation1 + $0x8] sm:$0xff pattern:$0x75316420]
        %v439 = vsel %vm337, %v390, %v424
        %v440 = vsel %vm337, %v391, %v425
        %v441 = vsel %vm337, %v408, %v430
        %v442 = vsel %vm337, %v411, %v431
        %v443 = vpack.c.bf16 %v441, %v439
        %v444 = vpack.c.bf16 %v442, %v440
        %v445 = vpack.c.bf16 %v435, %v435
        %v446 = vpack.c.bf16 %v436, %v436
        %v447 = vld [vmem:[%s2] sm:$0xf]
        %v448 = vld [vmem:[%s2 + $0x4] sm:$0xf]
        %v449 = vld [vmem:[%s2 + $0x8] sm:$0xf]
        %v450 = vld [vmem:[%s2 + $0xc] sm:$0xf]
        %v455 = vunpack.c.l.b16 %v447
        %v456 = vunpack.c.l.b16 %v448
        %v457 = vunpack.c.l.b16 %v449
        %v458 = vunpack.c.l.b16 %v450
        %v459 = vpack.c.b16 %v456, %v455
        %v460 = vpack.c.b16 %v458, %v457
        %vm461 = vcmask 162816
        %v463 = vsel %vm461, %v459, 0
        %v466 = vsel %vm461, %v460, 0
        %v469 = vsel %vm357, %v445, 0
        %v472 = vsel %vm357, %v446, 0
        %474 = vmatpush.bf16.msra.mxu0 0
        %475 = vmatpush.bf16.msra.mxu0 0
        %476 = vmatpush.bf16.msra.mxu0 0
        %477 = vmatpush.bf16.msra.mxu0 0
        %478 = vmatpush.bf16.msra.mxu0 0
        %479 = vmatpush.bf16.msra.mxu0 0
        %480 = vmatpush.bf16.msra.mxu0 %v469
        %481 = vmatpush.bf16.msra.mxu0 %v443
        %482 = vmatmul.bf16.gmra.mxu0 %v463
        %v483 = vpop.f32.mrf.mxu0
        %v484 = vadd.f32 0.0, %v483
        %v485 = vpop.f32.mrf.mxu0
        %v486 = vadd.f32 0.0, %v485
        %487 = vmatmul.bf16.gmra.mxu0 %v466
        %v488 = vpop.f32.mrf.mxu0
        %v489 = vadd.f32 0.0, %v488
        %v490 = vpop.f32.mrf.mxu0
        %v491 = vadd.f32 0.0, %v490
        %492 = vdwg.mxu0
        %493 = vmatpush.bf16.msra.mxu0 0
        %494 = vmatpush.bf16.msra.mxu0 0
        %495 = vmatpush.bf16.msra.mxu0 0
        %496 = vmatpush.bf16.msra.mxu0 0
        %497 = vmatpush.bf16.msra.mxu0 0
        %498 = vmatpush.bf16.msra.mxu0 0
        %499 = vmatpush.bf16.msra.mxu0 %v472
        %500 = vmatpush.bf16.msra.mxu0 %v444
        %501 = vmatmul.bf16.gmra.mxu0 %v463
        %v502 = vpop.f32.mrf.mxu0
        %v503 = vadd.f32 0.0, %v502
        %v504 = vpop.f32.mrf.mxu0
        %v505 = vadd.f32 0.0, %v504
        %506 = vmatmul.bf16.gmra.mxu0 %v466
        %v507 = vpop.f32.mrf.mxu0
        %v508 = vadd.f32 0.0, %v507
        %v509 = vpop.f32.mrf.mxu0
        %v510 = vadd.f32 0.0, %v509
        %511 = vdwg.mxu0
        %v512 = vmax.f32 %v484, 0.0
        %v513 = vmax.f32 %v503, 0.0
        %v514 = vmax.f32 %v486, 0.0
        %v515 = vmax.f32 %v505, 0.0
        %v516 = vmax.f32 %v489, 0.0
        %v517 = vmax.f32 %v508, 0.0
        %v518 = vmax.f32 %v491, 0.0
        %v519 = vmax.f32 %v510, 0.0
        %520 = vst [vmem:[%s163] sm:$0xff] %v512
        %521 = vst [vmem:[%s163 + $0x8] sm:$0xff] %v513
        %522 = vst [vmem:[%s163 + $0x10] sm:$0xff] %v514
        %523 = vst [vmem:[%s163 + $0x18] sm:$0xff] %v515
        %524 = vst [vmem:[%s163 + $0x20] sm:$0xff] %v516
        %525 = vst [vmem:[%s163 + $0x28] sm:$0xff] %v517
        %526 = vst [vmem:[%s163 + $0x30] sm:$0xff] %v518
        %527 = vst [vmem:[%s163 + $0x38] sm:$0xff] %v519
        %s528 = sand.u32 %s93, 1
        %s529 = scalar_lea.sflag [#allocation3], %s528
        %s530 = sand.u32 %s93, 1
        %s531 = smul.addr %s530, 64
        %s532 = scalar_lea.vmem [#allocation2], %s531
        // Predicated region
        $region33: #{tpu_custom_call.1} parent=31 // pred_check
          %p533 = pneg %p103
        $region34: #{tpu_custom_call.1} parent=31 // pred_check_branch
          %535 = sbr.rel (%p533) target = $region36
        $region35: #{tpu_custom_call.1} parent=31 // pred_region
          %537 = vsyncadd %s529, 0
          %s538 = smul.addr %s17, 8
          %s539 = smul.addr %s538, 8
          %s540 = scalar_lea.hbm %s3, %s539
          %s541 = sshll.u32 %s532, 4
          %s542 = int_to_ptr.vmem [resolvable:$true] %s541
          %s543 = sshll.u32 %s540, 4
          %s544 = int_to_ptr.hbm [resolvable:$true] %s543
          %549 = dma.vmem_to_hbm [thread:$0]  %s542, 1024, %s544, %s529, 256, 256, 16
        $region36: #{tpu_custom_call.1} parent=31 // pred_fallthru
          _
      $region32: #{tpu_custom_call.1} parent=5 // pred_fallthru
        _
      %p550 = scmp.le.s32.totalorder 2, %s12
      // Predicated region
      $region37: #{tpu_custom_call.1} parent=5 // pred_check
        %p551 = pneg %p550
      $region38: #{tpu_custom_call.1} parent=5 // pred_check_branch
        %553 = sbr.rel (%p551) target = $region40
      $region39: #{tpu_custom_call.1} parent=5 // pred_region
        %s554 = ssub.s32 %s12, 2
        // Predicated region
        $region41: #{tpu_custom_call.1} parent=39 // pred_check
          %p555 = pneg %p109
        $region42: #{tpu_custom_call.1} parent=39 // pred_check_branch
          %557 = sbr.rel (%p555) target = $region44
        $region43: #{tpu_custom_call.1} parent=39 // pred_region
          %s558 = sand.u32 %s94, 1
          %s559 = scalar_lea.sflag [#allocation3], %s558
          %s560 = sand.u32 %s94, 1
          %s561 = smul.addr %s560, 64
          %s562 = scalar_lea.vmem [#allocation2], %s561
          %564 = dma.done %s559, 1024
        $region44: #{tpu_custom_call.1} parent=39 // pred_fallthru
          _
      $region40: #{tpu_custom_call.1} parent=5 // pred_fallthru
        _
    $region6: #{tpu_custom_call.1} parent=1 // loop_footer
      %s16 = sadd.s32 1, %s12
    $region7: #{tpu_custom_call.1} parent=1 // loop_footer_branch
      %11 = sbr.rel target = $region3
    $region8: #{tpu_custom_call.1} parent=1 // loop_exit
      _
    %565 = vsyncpa [#allocation3], 1
    %s566 = scalar_lea.sflag [#allocation3], 1
    %567 = vsyncpa %s566, 1

</llo_original>
